<compile_context>
chip_gen: v6e
topology: v6e:2x2x1
jax: 0.10.0
libtpu: 0.0.40
codegen_flags: <defaults>
</compile_context>

<pallas_src>
import jax
import jax.numpy as jnp
from jax.experimental import pallas as pl
from jax.experimental.pallas import tpu as pltpu

ALPHA = 0.001
BETA = 0.01


# ----------------------------- Pallas kernel -------------------------------

def _prnn_kernel(x_ref, wf_ref, bf_ref, wi_ref, bi_ref, bih_ref,
                 wa_ref, wb_ref, wc_ref, wd_ref, wih_ref,
                 h_out_ref, wih_out_ref):
    # x_ref:    (1, 1, D)  concatenated [inputs, hidden] row for this batch elem
    # wf_ref:   (H, D)     forget-gate weights        bf_ref: (H, 1)
    # wi_ref:   (H, D)     input-gate weights         bi_ref: (H, 1)
    # bih_ref:  (H, 1)     bias of the plastic matvec
    # wa..wd:   (H, D)     plasticity templates (shared across batch)
    # wih_ref:  (1, H, D)  this sample's plastic weight matrix
    x_row = x_ref[0]                       # (1, D) — broadcasts over sublanes
    wih_b = wih_ref[0]                     # (H, D)

    # gate_signal = sigmoid(Linear(x)); done as multiply + lane-reduce so the
    # result is already a (H, 1) column (no transposes, no 2H-slicing).
    forget = jax.nn.sigmoid(
        jnp.sum(wf_ref[...] * x_row, axis=-1, keepdims=True) + bf_ref[...])   # (H, 1)
    in_gate = jax.nn.sigmoid(
        jnp.sum(wi_ref[...] * x_row, axis=-1, keepdims=True) + bi_ref[...])   # (H, 1)

    # new_hidden = tanh(einsum('j,kj->k', x, wih) + bih)
    h_new = jnp.tanh(
        jnp.sum(wih_b * x_row, axis=-1, keepdims=True) + bih_ref[...])        # (H, 1)

    # Plasticity update, factored:
    #   y⊗x*Wa + 1⊗x*Wb + y⊗1*Wc + 1⊗1*Wd  =  x*(h*Wa + Wb) + (h*Wc + Wd)
    decay = 1.0 - BETA * forget                                               # (H, 1)
    gain = ALPHA * in_gate                                                    # (H, 1)
    outer = (x_row * (h_new * wa_ref[...] + wb_ref[...])
             + (h_new * wc_ref[...] + wd_ref[...]))                           # (H, D)

    wih_out_ref[0] = (wih_b * decay + gain * outer).astype(wih_out_ref.dtype)
    h_out_ref[0] = h_new.astype(h_out_ref.dtype)


# ------------------------------ JAX wrapper ---------------------------------

def prnn_cell_forward(inputs, params, memories=None):
    """inputs: (B, I) float32.  memories: (hidden (B, H), wih (B, H, I+H)) or None.
    Returns (new_hidden (B, H), new_wih (B, H, I+H))."""
    B, I = inputs.shape
    H = params["bih"].shape[0]
    D = I + H
    dt = jnp.float32

    if memories is None:
        hidden = jnp.zeros((B, H), dt)
        wih = jnp.zeros((B, H, D), dt)
    else:
        hidden, wih = memories

    # concat is plain data prep; keep it in the wrapper.
    x = jnp.concatenate([inputs.astype(dt), hidden.astype(dt)], axis=1)
    x = x.reshape(B, 1, D)

    w_g = params["w_gates"]                      # (2H, D)  nn.Linear weight
    b_g = params["b_gates"]                      # (2H,)    nn.Linear bias
    wf, wi = w_g[:H], w_g[H:]                    # (H, D) each
    bf, bi = b_g[:H, None], b_g[H:, None]        # (H, 1) each
    bih = params["bih"][:, None]                 # (H, 1)

    grid_spec = pltpu.PrefetchScalarGridSpec(
        num_scalar_prefetch=0,
        grid=(B,),
        in_specs=[
            pl.BlockSpec((1, 1, D), lambda b: (b, 0, 0)),    # x row (per batch)
            pl.BlockSpec((H, D), lambda b: (0, 0)),          # W_forget
            pl.BlockSpec((H, 1), lambda b: (0, 0)),          # b_forget
            pl.BlockSpec((H, D), lambda b: (0, 0)),          # W_input
            pl.BlockSpec((H, 1), lambda b: (0, 0)),          # b_input
            pl.BlockSpec((H, 1), lambda b: (0, 0)),          # bih
            pl.BlockSpec((H, D), lambda b: (0, 0)),          # Wih_a
            pl.BlockSpec((H, D), lambda b: (0, 0)),          # Wih_b
            pl.BlockSpec((H, D), lambda b: (0, 0)),          # Wih_c
            pl.BlockSpec((H, D), lambda b: (0, 0)),          # Wih_d
            pl.BlockSpec((1, H, D), lambda b: (b, 0, 0)),    # wih (per batch)
        ],
        out_specs=[
            pl.BlockSpec((1, H, 1), lambda b: (b, 0, 0)),    # new_hidden (B, H, 1)
            pl.BlockSpec((1, H, D), lambda b: (b, 0, 0)),    # new_wih    (B, H, D)
        ],
    )

    h_col, new_wih = pl.pallas_call(
        _prnn_kernel,
        out_shape=(
            jax.ShapeDtypeStruct((B, H, 1), dt),
            jax.ShapeDtypeStruct((B, H, D), dt),
        ),
        grid_spec=grid_spec,
        compiler_params=pltpu.CompilerParams(
            dimension_semantics=("parallel",)),              # batch rows independent
    )(x, wf, bf, wi, bi, bih,
      params["Wih_a"], params["Wih_b"], params["Wih_c"], params["Wih_d"], wih)

    return h_col[:, :, 0], new_wih


# --------------------------- parameter helpers ------------------------------

def init_params(key, input_size, hidden_size):
    """Shapes match PRNNCell. Wih_a..d ~ xavier-uniform; the gates Linear uses
    the PyTorch default U(-1/sqrt(D), 1/sqrt(D)). bih is zero-initialized in
    the module; here it is drawn small-random so the bias path is exercised."""
    H, I = hidden_size, input_size
    D = I + H
    keys = jax.random.split(key, 8)
    u = lambda k, shape, s: jax.random.uniform(k, shape, jnp.float32, -s, s)
    xav = jnp.sqrt(6.0 / (H + D))
    lin = 1.0 / jnp.sqrt(jnp.float32(D))
    return {
        "Wih_a": u(keys[0], (H, D), xav),
        "Wih_b": u(keys[1], (H, D), xav),
        "Wih_c": u(keys[2], (H, D), xav),
        "Wih_d": u(keys[3], (H, D), xav),
        "bih": u(keys[4], (H,), 0.1),
        "w_gates": u(keys[5], (2 * H, D), lin),
        "b_gates": u(keys[6], (2 * H,), lin),
    }


def reference_forward(inputs, params, memories=None):
    """Pure-JAX reference matching the PyTorch PRNNCell.forward semantics."""
    B, I = inputs.shape
    H = params["bih"].shape[0]
    D = I + H
    if memories is None:
        hidden = jnp.zeros((B, H), jnp.float32)
        wih = jnp.zeros((B, H, D), jnp.float32)
    else:
        hidden, wih = memories

    x = jnp.concatenate([inputs, hidden], axis=1)                       # (B, D)
    gate = jax.nn.sigmoid(x @ params["w_gates"].T + params["b_gates"])  # (B, 2H)
    forget = gate[:, :H]
    in_gate = gate[:, H:]

    new_hidden = jnp.tanh(jnp.einsum('ij,ikj->ik', x, wih) + params["bih"])

    y = new_hidden[:, :, None]                                          # (B, H, 1)
    xr = x[:, None, :]                                                  # (B, 1, D)
    new_wih = wih * (1.0 - BETA * forget[:, :, None]) + ALPHA * in_gate[:, :, None] * (
        y * xr * params["Wih_a"] + xr * params["Wih_b"]
        + y * params["Wih_c"] + params["Wih_d"])
    return new_hidden, new_wih


# --------------------------------- main --------------------------------------

if __name__ == "__main__":
    B, I, H = 2, 16, 32
    D = I + H
    key = jax.random.PRNGKey(0)
    kp, kx, kh, kw = jax.random.split(key, 4)
    params = init_params(kp, I, H)
    inputs = jax.random.normal(kx, (B, I), jnp.float32)

    # 1) fresh-memory path (memories=None -> zeros, as in init_memories)
    h0, w0 = prnn_cell_forward(inputs, params, None)
    jax.block_until_ready((h0, w0))
    rh0, rw0 = reference_forward(inputs, params, None)
    assert jnp.allclose(h0, rh0, atol=1e-5, rtol=1e-5), "new_hidden mismatch (fresh memories)"
    assert jnp.allclose(w0, rw0, atol=1e-5, rtol=1e-5), "wih mismatch (fresh memories)"

    # 2) non-trivial carried memories
    hidden_m = 0.5 * jax.random.normal(kh, (B, H), jnp.float32)
    wih_m = 0.1 * jax.random.normal(kw, (B, H, D), jnp.float32)
    h1, w1 = prnn_cell_forward(inputs, params, (hidden_m, wih_m))
    jax.block_until_ready((h1, w1))
    rh1, rw1 = reference_forward(inputs, params, (hidden_m, wih_m))
    assert jnp.allclose(h1, rh1, atol=1e-5, rtol=1e-5), "new_hidden mismatch (carried memories)"
    assert jnp.allclose(w1, rw1, atol=1e-5, rtol=1e-5), "wih mismatch (carried memories)"

    print("KERNEL_OK")
</pallas_src>

<mosaic_0001>
module attributes {stable_mosaic.version = 11 : i64} {
  func.func @_prnn_kernel(%arg0: i32, %arg1: memref<1x1x48xf32, #tpu.memory_space<vmem>>, %arg2: memref<32x48xf32, #tpu.memory_space<vmem>>, %arg3: memref<32x1xf32, #tpu.memory_space<vmem>>, %arg4: memref<32x48xf32, #tpu.memory_space<vmem>>, %arg5: memref<32x1xf32, #tpu.memory_space<vmem>>, %arg6: memref<32x1xf32, #tpu.memory_space<vmem>>, %arg7: memref<32x48xf32, #tpu.memory_space<vmem>>, %arg8: memref<32x48xf32, #tpu.memory_space<vmem>>, %arg9: memref<32x48xf32, #tpu.memory_space<vmem>>, %arg10: memref<32x48xf32, #tpu.memory_space<vmem>>, %arg11: memref<1x32x48xf32, #tpu.memory_space<vmem>>, %arg12: memref<1x32x1xf32, #tpu.memory_space<vmem>>, %arg13: memref<1x32x48xf32, #tpu.memory_space<vmem>>) attributes {dimension_semantics = [#tpu.dimension_semantics<parallel>], iteration_bounds = array<i64: 2>, scalar_prefetch = 0 : i64, scratch_operands = 0 : i64, tpu.core_type = #tpu.core_type<tc>, window_params = [{transform_indices = @transform_0, window_bounds = array<i64: 1, 1, 48>}, {pipeline_mode = #tpu.pipeline_mode<synchronous>, transform_indices = @transform_1, window_bounds = array<i64: 32, 48>}, {pipeline_mode = #tpu.pipeline_mode<synchronous>, transform_indices = @transform_2, window_bounds = array<i64: 32, 1>}, {pipeline_mode = #tpu.pipeline_mode<synchronous>, transform_indices = @transform_3, window_bounds = array<i64: 32, 48>}, {pipeline_mode = #tpu.pipeline_mode<synchronous>, transform_indices = @transform_4, window_bounds = array<i64: 32, 1>}, {pipeline_mode = #tpu.pipeline_mode<synchronous>, transform_indices = @transform_5, window_bounds = array<i64: 32, 1>}, {pipeline_mode = #tpu.pipeline_mode<synchronous>, transform_indices = @transform_6, window_bounds = array<i64: 32, 48>}, {pipeline_mode = #tpu.pipeline_mode<synchronous>, transform_indices = @transform_7, window_bounds = array<i64: 32, 48>}, {pipeline_mode = #tpu.pipeline_mode<synchronous>, transform_indices = @transform_8, window_bounds = array<i64: 32, 48>}, {pipeline_mode = #tpu.pipeline_mode<synchronous>, transform_indices = @transform_9, window_bounds = array<i64: 32, 48>}, {transform_indices = @transform_10, window_bounds = array<i64: 1, 32, 48>}, {transform_indices = @transform_11, window_bounds = array<i64: 1, 32, 1>}, {transform_indices = @transform_12, window_bounds = array<i64: 1, 32, 48>}]} {
    %c0 = arith.constant 0 : index
    %c0_0 = arith.constant 0 : index
    %c0_1 = arith.constant 0 : index
    %0 = vector.load %arg1[%c0, %c0_0, %c0_1] : memref<1x1x48xf32, #tpu.memory_space<vmem>>, vector<1x1x48xf32>
    %1 = vector.shape_cast %0 : vector<1x1x48xf32> to vector<1x48xf32>
    %c0_2 = arith.constant 0 : index
    %c0_3 = arith.constant 0 : index
    %c0_4 = arith.constant 0 : index
    %2 = vector.load %arg11[%c0_2, %c0_3, %c0_4] : memref<1x32x48xf32, #tpu.memory_space<vmem>>, vector<1x32x48xf32>
    %3 = vector.shape_cast %2 : vector<1x32x48xf32> to vector<32x48xf32>
    %c0_5 = arith.constant 0 : index
    %c0_6 = arith.constant 0 : index
    %4 = vector.load %arg2[%c0_5, %c0_6] : memref<32x48xf32, #tpu.memory_space<vmem>>, vector<32x48xf32>
    %5 = vector.broadcast %1 : vector<1x48xf32> to vector<32x48xf32>
    %6 = arith.mulf %4, %5 : vector<32x48xf32>
    %cst = arith.constant dense<0.000000e+00> : vector<32xf32>
    %7 = vector.multi_reduction <add>, %6, %cst [1] : vector<32x48xf32> to vector<32xf32>
    %8 = vector.shape_cast %7 : vector<32xf32> to vector<32x1xf32>
    %c0_7 = arith.constant 0 : index
    %c0_8 = arith.constant 0 : index
    %9 = vector.load %arg3[%c0_7, %c0_8] : memref<32x1xf32, #tpu.memory_space<vmem>>, vector<32x1xf32>
    %10 = arith.addf %8, %9 : vector<32x1xf32>
    %11 = arith.negf %10 : vector<32x1xf32>
    %12 = math.exp %11 : vector<32x1xf32>
    %cst_9 = arith.constant 1.000000e+00 : f32
    %13 = vector.broadcast %cst_9 : f32 to vector<32x1xf32>
    %14 = arith.addf %13, %12 : vector<32x1xf32>
    %15 = arith.divf %13, %14 : vector<32x1xf32>
    %c0_10 = arith.constant 0 : index
    %c0_11 = arith.constant 0 : index
    %16 = vector.load %arg4[%c0_10, %c0_11] : memref<32x48xf32, #tpu.memory_space<vmem>>, vector<32x48xf32>
    %17 = vector.broadcast %1 : vector<1x48xf32> to vector<32x48xf32>
    %18 = arith.mulf %16, %17 : vector<32x48xf32>
    %cst_12 = arith.constant dense<0.000000e+00> : vector<32xf32>
    %19 = vector.multi_reduction <add>, %18, %cst_12 [1] : vector<32x48xf32> to vector<32xf32>
    %20 = vector.shape_cast %19 : vector<32xf32> to vector<32x1xf32>
    %c0_13 = arith.constant 0 : index
    %c0_14 = arith.constant 0 : index
    %21 = vector.load %arg5[%c0_13, %c0_14] : memref<32x1xf32, #tpu.memory_space<vmem>>, vector<32x1xf32>
    %22 = arith.addf %20, %21 : vector<32x1xf32>
    %23 = arith.negf %22 : vector<32x1xf32>
    %24 = math.exp %23 : vector<32x1xf32>
    %cst_15 = arith.constant 1.000000e+00 : f32
    %25 = vector.broadcast %cst_15 : f32 to vector<32x1xf32>
    %26 = arith.addf %25, %24 : vector<32x1xf32>
    %27 = arith.divf %25, %26 : vector<32x1xf32>
    %28 = vector.broadcast %1 : vector<1x48xf32> to vector<32x48xf32>
    %29 = arith.mulf %3, %28 : vector<32x48xf32>
    %cst_16 = arith.constant dense<0.000000e+00> : vector<32xf32>
    %30 = vector.multi_reduction <add>, %29, %cst_16 [1] : vector<32x48xf32> to vector<32xf32>
    %31 = vector.shape_cast %30 : vector<32xf32> to vector<32x1xf32>
    %c0_17 = arith.constant 0 : index
    %c0_18 = arith.constant 0 : index
    %32 = vector.load %arg6[%c0_17, %c0_18] : memref<32x1xf32, #tpu.memory_space<vmem>>, vector<32x1xf32>
    %33 = arith.addf %31, %32 : vector<32x1xf32>
    %34 = math.tanh %33 : vector<32x1xf32>
    %cst_19 = arith.constant 0.00999999977 : f32
    %35 = vector.broadcast %cst_19 : f32 to vector<32x1xf32>
    %36 = arith.mulf %35, %15 : vector<32x1xf32>
    %cst_20 = arith.constant 1.000000e+00 : f32
    %37 = vector.broadcast %cst_20 : f32 to vector<32x1xf32>
    %38 = arith.subf %37, %36 : vector<32x1xf32>
    %cst_21 = arith.constant 1.000000e-03 : f32
    %39 = vector.broadcast %cst_21 : f32 to vector<32x1xf32>
    %40 = arith.mulf %39, %27 : vector<32x1xf32>
    %c0_22 = arith.constant 0 : index
    %c0_23 = arith.constant 0 : index
    %41 = vector.load %arg7[%c0_22, %c0_23] : memref<32x48xf32, #tpu.memory_space<vmem>>, vector<32x48xf32>
    %42 = vector.broadcast %34 : vector<32x1xf32> to vector<32x48xf32>
    %43 = arith.mulf %42, %41 : vector<32x48xf32>
    %c0_24 = arith.constant 0 : index
    %c0_25 = arith.constant 0 : index
    %44 = vector.load %arg8[%c0_24, %c0_25] : memref<32x48xf32, #tpu.memory_space<vmem>>, vector<32x48xf32>
    %45 = arith.addf %43, %44 : vector<32x48xf32>
    %46 = vector.broadcast %1 : vector<1x48xf32> to vector<32x48xf32>
    %47 = arith.mulf %46, %45 : vector<32x48xf32>
    %c0_26 = arith.constant 0 : index
    %c0_27 = arith.constant 0 : index
    %48 = vector.load %arg9[%c0_26, %c0_27] : memref<32x48xf32, #tpu.memory_space<vmem>>, vector<32x48xf32>
    %49 = vector.broadcast %34 : vector<32x1xf32> to vector<32x48xf32>
    %50 = arith.mulf %49, %48 : vector<32x48xf32>
    %c0_28 = arith.constant 0 : index
    %c0_29 = arith.constant 0 : index
    %51 = vector.load %arg10[%c0_28, %c0_29] : memref<32x48xf32, #tpu.memory_space<vmem>>, vector<32x48xf32>
    %52 = arith.addf %50, %51 : vector<32x48xf32>
    %53 = arith.addf %47, %52 : vector<32x48xf32>
    %54 = vector.broadcast %38 : vector<32x1xf32> to vector<32x48xf32>
    %55 = arith.mulf %3, %54 : vector<32x48xf32>
    %56 = vector.broadcast %40 : vector<32x1xf32> to vector<32x48xf32>
    %57 = arith.mulf %56, %53 : vector<32x48xf32>
    %58 = arith.addf %55, %57 : vector<32x48xf32>
    %c0_30 = arith.constant 0 : index
    %c0_31 = arith.constant 0 : index
    %c0_32 = arith.constant 0 : index
    %59 = vector.load %arg13[%c0_30, %c0_31, %c0_32] : memref<1x32x48xf32, #tpu.memory_space<vmem>>, vector<1x32x48xf32>
    %60 = vector.shape_cast %59 : vector<1x32x48xf32> to vector<32x48xf32>
    %61 = vector.shape_cast %58 : vector<32x48xf32> to vector<1x32x48xf32>
    tpu.vector_store %arg13[%c0_30, %c0_31, %c0_32], %61 {strides = array<i32>} : memref<1x32x48xf32, #tpu.memory_space<vmem>>, vector<1x32x48xf32>,
    %c0_33 = arith.constant 0 : index
    %c0_34 = arith.constant 0 : index
    %c0_35 = arith.constant 0 : index
    %62 = vector.load %arg12[%c0_33, %c0_34, %c0_35] : memref<1x32x1xf32, #tpu.memory_space<vmem>>, vector<1x32x1xf32>
    %63 = vector.shape_cast %62 : vector<1x32x1xf32> to vector<32x1xf32>
    %64 = vector.shape_cast %34 : vector<32x1xf32> to vector<1x32x1xf32>
    tpu.vector_store %arg12[%c0_33, %c0_34, %c0_35], %64 {strides = array<i32>} : memref<1x32x1xf32, #tpu.memory_space<vmem>>, vector<1x32x1xf32>,
    return
  }
  func.func @transform_0(%arg0: i32) -> (i32, i32, i32) {
    %c0_i32 = arith.constant 0 : i32
    %c0_i32_0 = arith.constant 0 : i32
    %c0_i32_1 = arith.constant 0 : i32
    return %arg0, %c0_i32, %c0_i32_0 : i32, i32, i32
  }
  func.func @transform_1(%arg0: i32) -> (i32, i32) {
    %c0_i32 = arith.constant 0 : i32
    %c0_i32_0 = arith.constant 0 : i32
    %c0_i32_1 = arith.constant 0 : i32
    return %c0_i32, %c0_i32_0 : i32, i32
  }
  func.func @transform_2(%arg0: i32) -> (i32, i32) {
    %c0_i32 = arith.constant 0 : i32
    %c0_i32_0 = arith.constant 0 : i32
    %c0_i32_1 = arith.constant 0 : i32
    return %c0_i32, %c0_i32_0 : i32, i32
  }
  func.func @transform_3(%arg0: i32) -> (i32, i32) {
    %c0_i32 = arith.constant 0 : i32
    %c0_i32_0 = arith.constant 0 : i32
    %c0_i32_1 = arith.constant 0 : i32
    return %c0_i32, %c0_i32_0 : i32, i32
  }
  func.func @transform_4(%arg0: i32) -> (i32, i32) {
    %c0_i32 = arith.constant 0 : i32
    %c0_i32_0 = arith.constant 0 : i32
    %c0_i32_1 = arith.constant 0 : i32
    return %c0_i32, %c0_i32_0 : i32, i32
  }
  func.func @transform_5(%arg0: i32) -> (i32, i32) {
    %c0_i32 = arith.constant 0 : i32
    %c0_i32_0 = arith.constant 0 : i32
    %c0_i32_1 = arith.constant 0 : i32
    return %c0_i32, %c0_i32_0 : i32, i32
  }
  func.func @transform_6(%arg0: i32) -> (i32, i32) {
    %c0_i32 = arith.constant 0 : i32
    %c0_i32_0 = arith.constant 0 : i32
    %c0_i32_1 = arith.constant 0 : i32
    return %c0_i32, %c0_i32_0 : i32, i32
  }
  func.func @transform_7(%arg0: i32) -> (i32, i32) {
    %c0_i32 = arith.constant 0 : i32
    %c0_i32_0 = arith.constant 0 : i32
    %c0_i32_1 = arith.constant 0 : i32
    return %c0_i32, %c0_i32_0 : i32, i32
  }
  func.func @transform_8(%arg0: i32) -> (i32, i32) {
    %c0_i32 = arith.constant 0 : i32
    %c0_i32_0 = arith.constant 0 : i32
    %c0_i32_1 = arith.constant 0 : i32
    return %c0_i32, %c0_i32_0 : i32, i32
  }
  func.func @transform_9(%arg0: i32) -> (i32, i32) {
    %c0_i32 = arith.constant 0 : i32
    %c0_i32_0 = arith.constant 0 : i32
    %c0_i32_1 = arith.constant 0 : i32
    return %c0_i32, %c0_i32_0 : i32, i32
  }
  func.func @transform_10(%arg0: i32) -> (i32, i32, i32) {
    %c0_i32 = arith.constant 0 : i32
    %c0_i32_0 = arith.constant 0 : i32
    %c0_i32_1 = arith.constant 0 : i32
    return %arg0, %c0_i32, %c0_i32_0 : i32, i32, i32
  }
  func.func @transform_11(%arg0: i32) -> (i32, i32, i32) {
    %c0_i32 = arith.constant 0 : i32
    %c0_i32_0 = arith.constant 0 : i32
    %c0_i32_1 = arith.constant 0 : i32
    return %arg0, %c0_i32, %c0_i32_0 : i32, i32, i32
  }
  func.func @transform_12(%arg0: i32) -> (i32, i32, i32) {
    %c0_i32 = arith.constant 0 : i32
    %c0_i32_0 = arith.constant 0 : i32
    %c0_i32_1 = arith.constant 0 : i32
    return %arg0, %c0_i32, %c0_i32_0 : i32, i32, i32
  }
}

</mosaic_0001>

<llo_original>
// kernel: tpu_custom_call.1
$region0: #{tpu_custom_call.1}
  #allocation0 [shape = 'u32[]', space=smem, size = 0x4, offset = 0x4, fixed_abs, tag = 'smem constant byte address 0x4 - core index']
  #allocation1 [shape = 'u32[144,128]{1,0:T(1,128)}', space=vmem, size = 0x12000, scoped, tag = 'internal scratch']
  %s0 = inlined_call_operand.vmem [shape: f32[2,1,48], index: 0, kind: input, shape index: {}]
  %s1 = inlined_call_operand.vmem [shape: f32[32,48], index: 1, kind: input, shape index: {}]
  %s2 = inlined_call_operand.vmem [shape: f32[32,1], index: 2, kind: input, shape index: {}]
  %s3 = inlined_call_operand.hbm [shape: f32[32,48], index: 3, kind: input, shape index: {}]
  %s4 = inlined_call_operand.vmem [shape: f32[32,1], index: 4, kind: input, shape index: {}]
  %s5 = inlined_call_operand.vmem [shape: f32[32,1], index: 5, kind: input, shape index: {}]
  %s6 = inlined_call_operand.hbm [shape: f32[32,48], index: 6, kind: input, shape index: {}]
  %s7 = inlined_call_operand.hbm [shape: f32[32,48], index: 7, kind: input, shape index: {}]
  %s8 = inlined_call_operand.hbm [shape: f32[32,48], index: 8, kind: input, shape index: {}]
  %s9 = inlined_call_operand.hbm [shape: f32[32,48], index: 9, kind: input, shape index: {}]
  %s10 = inlined_call_operand.vmem [shape: f32[2,32,48], index: 10, kind: input, shape index: {}]
  %s11 = inlined_call_operand.vmem [shape: f32[2,32,1], index: 11, kind: output, shape index: {0}]
  %s12 = inlined_call_operand.hbm [shape: f32[2,32,48], index: 12, kind: output, shape index: {1}]
  %13 = xla_tuple %s11, %s12
  %s14 = sld [smem:[#allocation0]]
  $region105: #{tpu_custom_call.1} parent=0
    _
  %s16 = ssub.s32 1, %s14
  %s17 = scalar_select 0, %s16, %s14
  $region1: #{tpu_custom_call.1} parent=0
    #allocation2 [shape = 'u8[16384]{0}', space=vmem, size = 0x4000, scoped, tag = 'input window, operand 3, single buffered']
    #allocation3 [shape = 's32[2]{0}', space=sflag, size = 0x8, scoped, tag = 'scoped memory for tpu_custom_call.1']
    #allocation4 [shape = 's32[2]{0}', space=sflag, size = 0x8, scoped, tag = 'scoped memory for tpu_custom_call.1']
    #allocation5 [shape = 'u8[16384]{0}', space=vmem, size = 0x4000, scoped, tag = 'input window, operand 6, single buffered']
    #allocation6 [shape = 's32[1]{0}', space=sflag, size = 0x4, scoped, tag = 'scoped memory for tpu_custom_call.1']
    #allocation7 [shape = 'u8[16384]{0}', space=vmem, size = 0x4000, scoped, tag = 'input window, operand 7, single buffered']
    #allocation8 [shape = 'u8[16384]{0}', space=vmem, size = 0x4000, scoped, tag = 'input window, operand 8, single buffered']
    #allocation9 [shape = 's32[1]{0}', space=sflag, size = 0x4, scoped, tag = 'scoped memory for tpu_custom_call.1']
    #allocation10 [shape = 'u8[16384]{0}', space=vmem, size = 0x4000, scoped, tag = 'input window, operand 9, single buffered']
    #allocation11 [shape = 'u8[32768]{0}', space=vmem, size = 0x8000, scoped, tag = 'output window, operand 1']
    %18 = vsyncpa [#allocation3], 0
    %19 = vsyncpa [#allocation6], 0
    %20 = vsyncpa [#allocation9], 0
    %21 = vsyncpa [#allocation4], 0
    %s22 = scalar_lea.sflag [#allocation4], 1
    %23 = vsyncpa %s22, 0
    loop: start=0, step=1, limit=4
    $region2: #{tpu_custom_call.1} parent=1 // loop_pre_header
      _
    $region3: #{tpu_custom_call.1} parent=1 // loop_header
      %s25 = sphi 0, %s29
      %p26 = scmp.ge.s32.totalorder %s25, 4
      %s35 = sphi 0, %s37
      %s38 = sphi 0, %s35
      %s39 = sphi 0, %s38
      %s55 = sphi 0, %s39
      %s59 = sphi 0, %s59
      %s61 = sphi 0, %s59
      %s62 = sphi 0, %s61
      %s76 = sphi 0, %s62
      %s80 = sphi 0, %s80
      %s82 = sphi 0, %s80
      %s83 = sphi 0, %s82
      %s97 = sphi 0, %s83
      %s101 = sphi 0, %s101
      %s103 = sphi 0, %s101
      %s104 = sphi 0, %s103
      %s118 = sphi 0, %s104
      %s122 = sphi 0, %s122
      %s124 = sphi 0, %s122
      %s125 = sphi 0, %s124
      %s139 = sphi 0, %s125
      %s143 = sphi 0, %s143
      %s145 = sphi 0, %s143
      %s146 = sphi 0, %s145
      %s160 = sphi 0, %s146
      %s164 = sphi 0, %s164
      %s166 = sphi 0, %s164
      %s167 = sphi 0, %s166
      %s181 = sphi 0, %s167
      %s185 = sphi 0, %s185
      %s187 = sphi 0, %s185
      %s188 = sphi 0, %s187
      %s202 = sphi 0, %s188
      %s206 = sphi 0, %s206
      %s208 = sphi 0, %s206
      %s209 = sphi 0, %s208
      %s223 = sphi 0, %s209
      %s227 = sphi 0, %s227
      %s229 = sphi 0, %s227
      %s230 = sphi 0, %s229
      %s244 = sphi 0, %s230
      %s250 = sphi 0, %s252
      %s253 = sphi 0, %s250
      %s254 = sphi 0, %s253
      %s270 = sphi 0, %s254
      %s276 = sphi 0, %s278
      %s279 = sphi 0, %s276
      %s280 = sphi 0, %s279
      %s296 = sphi 0, %s280
      %s302 = sphi 0, %s304
      %s305 = sphi 0, %s302
      %s306 = sphi 0, %s305
      %s322 = sphi 0, %s306
    $region4: #{tpu_custom_call.1} parent=1 // loop_header_branch
      %28 = sbr.rel (%p26) target = $region8
    $region5: #{tpu_custom_call.1} parent=1 // loop_body
      %s30 = ssub.s32 %s25, 1
      %s31 = ssub.s32 %s25, 2
      %s32 = sadd.s32 %s25, 1
      %s33 = ssub.s32 %s25, %s32
      %p34 = scmp.eq.s32.totalorder %s33, 0
      %s36 = sadd.s32 %s35, 1
      %s37 = scalar_select %p34, %s35, %s36
      %p40 = pneg %p34
      %p41 = scmp.eq.s32.totalorder %s25, 1
      %p42 = por %p40, %p41
      %p43 = scmp.ne.s32.totalorder %s35, %s38
      %p44 = scmp.eq.s32.totalorder %s25, 0
      %p45 = por %p43, %p44
      %p46 = scmp.ne.s32.totalorder %s35, %s38
      %p47 = scmp.eq.s32.totalorder %s30, 1
      %p48 = por %p46, %p47
      %p49 = scmp.ne.s32.totalorder %s38, %s39
      %p50 = scmp.eq.s32.totalorder %s30, 0
      %p51 = por %p49, %p50
      %p52 = scmp.ne.s32.totalorder %s38, %s39
      %p53 = scmp.eq.s32.totalorder %s31, 1
      %p54 = por %p52, %p53
      %p56 = scmp.ne.s32.totalorder %s39, %s55
      %p57 = scmp.eq.s32.totalorder %s31, 0
      %p58 = por %p56, %p57
      %s60 = sadd.s32 %s59, 1
      %p63 = scmp.eq.s32.totalorder %s25, 1
      %p64 = scmp.ne.s32.totalorder %s59, %s61
      %p65 = scmp.eq.s32.totalorder %s25, 0
      %p66 = por %p64, %p65
      %p67 = scmp.ne.s32.totalorder %s59, %s61
      %p68 = scmp.eq.s32.totalorder %s30, 1
      %p69 = por %p67, %p68
      %p70 = scmp.ne.s32.totalorder %s61, %s62
      %p71 = scmp.eq.s32.totalorder %s30, 0
      %p72 = por %p70, %p71
      %p73 = scmp.ne.s32.totalorder %s61, %s62
      %p74 = scmp.eq.s32.totalorder %s31, 1
      %p75 = por %p73, %p74
      %p77 = scmp.ne.s32.totalorder %s62, %s76
      %p78 = scmp.eq.s32.totalorder %s31, 0
      %p79 = por %p77, %p78
      %s81 = sadd.s32 %s80, 1
      %p84 = scmp.eq.s32.totalorder %s25, 1
      %p85 = scmp.ne.s32.totalorder %s80, %s82
      %p86 = scmp.eq.s32.totalorder %s25, 0
      %p87 = por %p85, %p86
      %p88 = scmp.ne.s32.totalorder %s80, %s82
      %p89 = scmp.eq.s32.totalorder %s30, 1
      %p90 = por %p88, %p89
      %p91 = scmp.ne.s32.totalorder %s82, %s83
      %p92 = scmp.eq.s32.totalorder %s30, 0
      %p93 = por %p91, %p92
      %p94 = scmp.ne.s32.totalorder %s82, %s83
      %p95 = scmp.eq.s32.totalorder %s31, 1
      %p96 = por %p94, %p95
      %p98 = scmp.ne.s32.totalorder %s83, %s97
      %p99 = scmp.eq.s32.totalorder %s31, 0
      %p100 = por %p98, %p99
      %s102 = sadd.s32 %s101, 1
      %p105 = scmp.eq.s32.totalorder %s25, 1
      %p106 = scmp.ne.s32.totalorder %s101, %s103
      %p107 = scmp.eq.s32.totalorder %s25, 0
      %p108 = por %p106, %p107
      %p109 = scmp.ne.s32.totalorder %s101, %s103
      %p110 = scmp.eq.s32.totalorder %s30, 1
      %p111 = por %p109, %p110
      %p112 = scmp.ne.s32.totalorder %s103, %s104
      %p113 = scmp.eq.s32.totalorder %s30, 0
      %p114 = por %p112, %p113
      %p115 = scmp.ne.s32.totalorder %s103, %s104
      %p116 = scmp.eq.s32.totalorder %s31, 1
      %p117 = por %p115, %p116
      %p119 = scmp.ne.s32.totalorder %s104, %s118
      %p120 = scmp.eq.s32.totalorder %s31, 0
      %p121 = por %p119, %p120
      %s123 = sadd.s32 %s122, 1
      %p126 = scmp.eq.s32.totalorder %s25, 1
      %p127 = scmp.ne.s32.totalorder %s122, %s124
      %p128 = scmp.eq.s32.totalorder %s25, 0
      %p129 = por %p127, %p128
      %p130 = scmp.ne.s32.totalorder %s122, %s124
      %p131 = scmp.eq.s32.totalorder %s30, 1
      %p132 = por %p130, %p131
      %p133 = scmp.ne.s32.totalorder %s124, %s125
      %p134 = scmp.eq.s32.totalorder %s30, 0
      %p135 = por %p133, %p134
      %p136 = scmp.ne.s32.totalorder %s124, %s125
      %p137 = scmp.eq.s32.totalorder %s31, 1
      %p138 = por %p136, %p137
      %p140 = scmp.ne.s32.totalorder %s125, %s139
      %p141 = scmp.eq.s32.totalorder %s31, 0
      %p142 = por %p140, %p141
      %s144 = sadd.s32 %s143, 1
      %p147 = scmp.eq.s32.totalorder %s25, 1
      %p148 = scmp.ne.s32.totalorder %s143, %s145
      %p149 = scmp.eq.s32.totalorder %s25, 0
      %p150 = por %p148, %p149
      %p151 = scmp.ne.s32.totalorder %s143, %s145
      %p152 = scmp.eq.s32.totalorder %s30, 1
      %p153 = por %p151, %p152
      %p154 = scmp.ne.s32.totalorder %s145, %s146
      %p155 = scmp.eq.s32.totalorder %s30, 0
      %p156 = por %p154, %p155
      %p157 = scmp.ne.s32.totalorder %s145, %s146
      %p158 = scmp.eq.s32.totalorder %s31, 1
      %p159 = por %p157, %p158
      %p161 = scmp.ne.s32.totalorder %s146, %s160
      %p162 = scmp.eq.s32.totalorder %s31, 0
      %p163 = por %p161, %p162
      %s165 = sadd.s32 %s164, 1
      %p168 = scmp.eq.s32.totalorder %s25, 1
      %p169 = scmp.ne.s32.totalorder %s164, %s166
      %p170 = scmp.eq.s32.totalorder %s25, 0
      %p171 = por %p169, %p170
      %p172 = scmp.ne.s32.totalorder %s164, %s166
      %p173 = scmp.eq.s32.totalorder %s30, 1
      %p174 = por %p172, %p173
      %p175 = scmp.ne.s32.totalorder %s166, %s167
      %p176 = scmp.eq.s32.totalorder %s30, 0
      %p177 = por %p175, %p176
      %p178 = scmp.ne.s32.totalorder %s166, %s167
      %p179 = scmp.eq.s32.totalorder %s31, 1
      %p180 = por %p178, %p179
      %p182 = scmp.ne.s32.totalorder %s167, %s181
      %p183 = scmp.eq.s32.totalorder %s31, 0
      %p184 = por %p182, %p183
      %s186 = sadd.s32 %s185, 1
      %p189 = scmp.eq.s32.totalorder %s25, 1
      %p190 = scmp.ne.s32.totalorder %s185, %s187
      %p191 = scmp.eq.s32.totalorder %s25, 0
      %p192 = por %p190, %p191
      %p193 = scmp.ne.s32.totalorder %s185, %s187
      %p194 = scmp.eq.s32.totalorder %s30, 1
      %p195 = por %p193, %p194
      %p196 = scmp.ne.s32.totalorder %s187, %s188
      %p197 = scmp.eq.s32.totalorder %s30, 0
      %p198 = por %p196, %p197
      %p199 = scmp.ne.s32.totalorder %s187, %s188
      %p200 = scmp.eq.s32.totalorder %s31, 1
      %p201 = por %p199, %p200
      %p203 = scmp.ne.s32.totalorder %s188, %s202
      %p204 = scmp.eq.s32.totalorder %s31, 0
      %p205 = por %p203, %p204
      %s207 = sadd.s32 %s206, 1
      %p210 = scmp.eq.s32.totalorder %s25, 1
      %p211 = scmp.ne.s32.totalorder %s206, %s208
      %p212 = scmp.eq.s32.totalorder %s25, 0
      %p213 = por %p211, %p212
      %p214 = scmp.ne.s32.totalorder %s206, %s208
      %p215 = scmp.eq.s32.totalorder %s30, 1
      %p216 = por %p214, %p215
      %p217 = scmp.ne.s32.totalorder %s208, %s209
      %p218 = scmp.eq.s32.totalorder %s30, 0
      %p219 = por %p217, %p218
      %p220 = scmp.ne.s32.totalorder %s208, %s209
      %p221 = scmp.eq.s32.totalorder %s31, 1
      %p222 = por %p220, %p221
      %p224 = scmp.ne.s32.totalorder %s209, %s223
      %p225 = scmp.eq.s32.totalorder %s31, 0
      %p226 = por %p224, %p225
      %s228 = sadd.s32 %s227, 1
      %p231 = scmp.eq.s32.totalorder %s25, 1
      %p232 = scmp.ne.s32.totalorder %s227, %s229
      %p233 = scmp.eq.s32.totalorder %s25, 0
      %p234 = por %p232, %p233
      %p235 = scmp.ne.s32.totalorder %s227, %s229
      %p236 = scmp.eq.s32.totalorder %s30, 1
      %p237 = por %p235, %p236
      %p238 = scmp.ne.s32.totalorder %s229, %s230
      %p239 = scmp.eq.s32.totalorder %s30, 0
      %p240 = por %p238, %p239
      %p241 = scmp.ne.s32.totalorder %s229, %s230
      %p242 = scmp.eq.s32.totalorder %s31, 1
      %p243 = por %p241, %p242
      %p245 = scmp.ne.s32.totalorder %s230, %s244
      %p246 = scmp.eq.s32.totalorder %s31, 0
      %p247 = por %p245, %p246
      %s248 = ssub.s32 %s25, %s32
      %p249 = scmp.eq.s32.totalorder %s248, 0
      %s251 = sadd.s32 %s250, 1
      %s252 = scalar_select %p249, %s250, %s251
      %p255 = pneg %p249
      %p256 = scmp.eq.s32.totalorder %s25, 1
      %p257 = por %p255, %p256
      %p258 = scmp.ne.s32.totalorder %s250, %s253
      %p259 = scmp.eq.s32.totalorder %s25, 0
      %p260 = por %p258, %p259
      %p261 = scmp.ne.s32.totalorder %s250, %s253
      %p262 = scmp.eq.s32.totalorder %s30, 1
      %p263 = por %p261, %p262
      %p264 = scmp.ne.s32.totalorder %s253, %s254
      %p265 = scmp.eq.s32.totalorder %s30, 0
      %p266 = por %p264, %p265
      %p267 = scmp.ne.s32.totalorder %s253, %s254
      %p268 = scmp.eq.s32.totalorder %s31, 1
      %p269 = por %p267, %p268
      %p271 = scmp.ne.s32.totalorder %s254, %s270
      %p272 = scmp.eq.s32.totalorder %s31, 0
      %p273 = por %p271, %p272
      %s274 = ssub.s32 %s25, %s32
      %p275 = scmp.eq.s32.totalorder %s274, 0
      %s277 = sadd.s32 %s276, 1
      %s278 = scalar_select %p275, %s276, %s277
      %p281 = pneg %p275
      %p282 = scmp.eq.s32.totalorder %s25, 1
      %p283 = por %p281, %p282
      %p284 = scmp.ne.s32.totalorder %s276, %s279
      %p285 = scmp.eq.s32.totalorder %s25, 0
      %p286 = por %p284, %p285
      %p287 = scmp.ne.s32.totalorder %s276, %s279
      %p288 = scmp.eq.s32.totalorder %s30, 1
      %p289 = por %p287, %p288
      %p290 = scmp.ne.s32.totalorder %s279, %s280
      %p291 = scmp.eq.s32.totalorder %s30, 0
      %p292 = por %p290, %p291
      %p293 = scmp.ne.s32.totalorder %s279, %s280
      %p294 = scmp.eq.s32.totalorder %s31, 1
      %p295 = por %p293, %p294
      %p297 = scmp.ne.s32.totalorder %s280, %s296
      %p298 = scmp.eq.s32.totalorder %s31, 0
      %p299 = por %p297, %p298
      %s300 = ssub.s32 %s25, %s32
      %p301 = scmp.eq.s32.totalorder %s300, 0
      %s303 = sadd.s32 %s302, 1
      %s304 = scalar_select %p301, %s302, %s303
      %p307 = pneg %p301
      %p308 = scmp.eq.s32.totalorder %s25, 1
      %p309 = por %p307, %p308
      %p310 = scmp.ne.s32.totalorder %s302, %s305
      %p311 = scmp.eq.s32.totalorder %s25, 0
      %p312 = por %p310, %p311
      %p313 = scmp.ne.s32.totalorder %s302, %s305
      %p314 = scmp.eq.s32.totalorder %s30, 1
      %p315 = por %p313, %p314
      %p316 = scmp.ne.s32.totalorder %s305, %s306
      %p317 = scmp.eq.s32.totalorder %s30, 0
      %p318 = por %p316, %p317
      %p319 = scmp.ne.s32.totalorder %s305, %s306
      %p320 = scmp.eq.s32.totalorder %s31, 1
      %p321 = por %p319, %p320
      %p323 = scmp.ne.s32.totalorder %s306, %s322
      %p324 = scmp.eq.s32.totalorder %s31, 0
      %p325 = por %p323, %p324
      %p326 = scmp.le.s32.totalorder 1, %s25
      %p327 = scmp.lt.s32.totalorder %s25, 3
      %p328 = pnand %p326, %p327
      %p329 = pneg %p328
      // Predicated region
      $region9: #{tpu_custom_call.1} parent=5 // pred_check
        _
      $region10: #{tpu_custom_call.1} parent=5 // pred_check_branch
        %331 = sbr.rel (%p328) target = $region12
      $region11: #{tpu_custom_call.1} parent=5 // pred_region
        %s332 = ssub.s32 %s25, 1
        // Predicated region
        $region13: #{tpu_custom_call.1} parent=11 // pred_check
          %p333 = pneg %p72
        $region14: #{tpu_custom_call.1} parent=11 // pred_check_branch
          %335 = sbr.rel (%p333) target = $region16
        $region15: #{tpu_custom_call.1} parent=11 // pred_region
          _
        $region16: #{tpu_custom_call.1} parent=11 // pred_fallthru
          _
        // Predicated region
        $region17: #{tpu_custom_call.1} parent=11 // pred_check
          %p336 = pneg %p93
        $region18: #{tpu_custom_call.1} parent=11 // pred_check_branch
          %338 = sbr.rel (%p336) target = $region20
        $region19: #{tpu_custom_call.1} parent=11 // pred_region
          _
        $region20: #{tpu_custom_call.1} parent=11 // pred_fallthru
          _
        // Predicated region
        $region21: #{tpu_custom_call.1} parent=11 // pred_check
          %p339 = pneg %p114
        $region22: #{tpu_custom_call.1} parent=11 // pred_check_branch
          %341 = sbr.rel (%p339) target = $region24
        $region23: #{tpu_custom_call.1} parent=11 // pred_region
          %s343 = ssub.s32 512, 512
          %344 = vsyncadd [#allocation3], %s343
          %s345 = sshll.u32 [#allocation2], 4
          %s346 = int_to_ptr.vmem [resolvable:$true] %s345
          %351 = dma.hbm_to_vmem [thread:$0]  %s3, 512, %s346, [#allocation3], 128, 128, 8
        $region24: #{tpu_custom_call.1} parent=11 // pred_fallthru
          _
        // Predicated region
        $region25: #{tpu_custom_call.1} parent=11 // pred_check
          %p352 = pneg %p135
        $region26: #{tpu_custom_call.1} parent=11 // pred_check_branch
          %354 = sbr.rel (%p352) target = $region28
        $region27: #{tpu_custom_call.1} parent=11 // pred_region
          _
        $region28: #{tpu_custom_call.1} parent=11 // pred_fallthru
          _
        // Predicated region
        $region29: #{tpu_custom_call.1} parent=11 // pred_check
          %p355 = pneg %p156
        $region30: #{tpu_custom_call.1} parent=11 // pred_check_branch
          %357 = sbr.rel (%p355) target = $region32
        $region31: #{tpu_custom_call.1} parent=11 // pred_region
          _
        $region32: #{tpu_custom_call.1} parent=11 // pred_fallthru
          _
        // Predicated region
        $region33: #{tpu_custom_call.1} parent=11 // pred_check
          %p358 = pneg %p177
        $region34: #{tpu_custom_call.1} parent=11 // pred_check_branch
          %360 = sbr.rel (%p358) target = $region36
        $region35: #{tpu_custom_call.1} parent=11 // pred_region
          %s362 = ssub.s32 512, 512
          %363 = vsyncadd [#allocation6], %s362
          %s364 = sshll.u32 [#allocation5], 4
          %s365 = int_to_ptr.vmem [resolvable:$true] %s364
          %370 = dma.hbm_to_vmem [thread:$0]  %s6, 512, %s365, [#allocation6], 128, 128, 8
        $region36: #{tpu_custom_call.1} parent=11 // pred_fallthru
          _
        // Predicated region
        $region37: #{tpu_custom_call.1} parent=11 // pred_check
          %p371 = pneg %p198
        $region38: #{tpu_custom_call.1} parent=11 // pred_check_branch
          %373 = sbr.rel (%p371) target = $region40
        $region39: #{tpu_custom_call.1} parent=11 // pred_region
          %s375 = ssub.s32 512, 512
          %376 = vsyncadd [#allocation6], %s375
          %s377 = sshll.u32 [#allocation7], 4
          %s378 = int_to_ptr.vmem [resolvable:$true] %s377
          %383 = dma.hbm_to_vmem [thread:$0]  %s7, 512, %s378, [#allocation6], 128, 128, 8
        $region40: #{tpu_custom_call.1} parent=11 // pred_fallthru
          _
        // Predicated region
        $region41: #{tpu_custom_call.1} parent=11 // pred_check
          %p384 = pneg %p219
        $region42: #{tpu_custom_call.1} parent=11 // pred_check_branch
          %386 = sbr.rel (%p384) target = $region44
        $region43: #{tpu_custom_call.1} parent=11 // pred_region
          %s388 = ssub.s32 512, 512
          %389 = vsyncadd [#allocation9], %s388
          %s390 = sshll.u32 [#allocation8], 4
          %s391 = int_to_ptr.vmem [resolvable:$true] %s390
          %396 = dma.hbm_to_vmem [thread:$0]  %s8, 512, %s391, [#allocation9], 128, 128, 8
        $region44: #{tpu_custom_call.1} parent=11 // pred_fallthru
          _
        // Predicated region
        $region45: #{tpu_custom_call.1} parent=11 // pred_check
          %p397 = pneg %p240
        $region46: #{tpu_custom_call.1} parent=11 // pred_check_branch
          %399 = sbr.rel (%p397) target = $region48
        $region47: #{tpu_custom_call.1} parent=11 // pred_region
          %s401 = ssub.s32 512, 512
          %402 = vsyncadd [#allocation9], %s401
          %s403 = sshll.u32 [#allocation10], 4
          %s404 = int_to_ptr.vmem [resolvable:$true] %s403
          %409 = dma.hbm_to_vmem [thread:$0]  %s9, 512, %s404, [#allocation9], 128, 128, 8
        $region48: #{tpu_custom_call.1} parent=11 // pred_fallthru
          _
      $region12: #{tpu_custom_call.1} parent=5 // pred_fallthru
        _
      %p410 = scmp.lt.s32.totalorder %s25, 2
      // Predicated region
      $region49: #{tpu_custom_call.1} parent=5 // pred_check
        %p411 = pneg %p410
      $region50: #{tpu_custom_call.1} parent=5 // pred_check_branch
        %413 = sbr.rel (%p411) target = $region52
      $region51: #{tpu_custom_call.1} parent=5 // pred_region
        // Predicated region
        $region53: #{tpu_custom_call.1} parent=51 // pred_check
          %p414 = pneg %p45
        $region54: #{tpu_custom_call.1} parent=51 // pred_check_branch
          %416 = sbr.rel (%p414) target = $region56
        $region55: #{tpu_custom_call.1} parent=51 // pred_region
          %p417 = scmp.lt.s32.totalorder %s25, 1
          %s418 = scalar_select %p417, %s25, 1
          %s419 = scalar_lea.vmem %s0, %s418
        $region56: #{tpu_custom_call.1} parent=51 // pred_fallthru
          _
        // Predicated region
        $region57: #{tpu_custom_call.1} parent=51 // pred_check
          %p420 = pneg %p260
        $region58: #{tpu_custom_call.1} parent=51 // pred_check_branch
          %422 = sbr.rel (%p420) target = $region60
        $region59: #{tpu_custom_call.1} parent=51 // pred_region
          %p423 = scmp.lt.s32.totalorder %s25, 1
          %s424 = scalar_select %p423, %s25, 1
          %s425 = smul.addr %s424, 4
          %s426 = smul.addr %s425, 8
          %s427 = scalar_lea.vmem %s10, %s426
        $region60: #{tpu_custom_call.1} parent=51 // pred_fallthru
          _
      $region52: #{tpu_custom_call.1} parent=5 // pred_fallthru
        _
      %p428 = scmp.le.s32.totalorder 1, %s25
      %p429 = scmp.lt.s32.totalorder %s25, 3
      %p430 = pnand %p428, %p429
      %p431 = pneg %p430
      // Predicated region
      $region61: #{tpu_custom_call.1} parent=5 // pred_check
        _
      $region62: #{tpu_custom_call.1} parent=5 // pred_check_branch
        %433 = sbr.rel (%p430) target = $region64
      $region63: #{tpu_custom_call.1} parent=5 // pred_region
        %s434 = ssub.s32 %s25, 1
        // Predicated region
        $region65: #{tpu_custom_call.1} parent=63 // pred_check
          %p435 = pneg %p114
        $region66: #{tpu_custom_call.1} parent=63 // pred_check_branch
          %437 = sbr.rel (%p435) target = $region68
        $region67: #{tpu_custom_call.1} parent=63 // pred_region
          %438 = dma.done [#allocation3], 512
        $region68: #{tpu_custom_call.1} parent=63 // pred_fallthru
          _
        // Predicated region
        $region69: #{tpu_custom_call.1} parent=63 // pred_check
          %p439 = pneg %p177
        $region70: #{tpu_custom_call.1} parent=63 // pred_check_branch
          %441 = sbr.rel (%p439) target = $region72
        $region71: #{tpu_custom_call.1} parent=63 // pred_region
          %442 = dma.done [#allocation6], 512
        $region72: #{tpu_custom_call.1} parent=63 // pred_fallthru
          _
        // Predicated region
        $region73: #{tpu_custom_call.1} parent=63 // pred_check
          %p443 = pneg %p198
        $region74: #{tpu_custom_call.1} parent=63 // pred_check_branch
          %445 = sbr.rel (%p443) target = $region76
        $region75: #{tpu_custom_call.1} parent=63 // pred_region
          %446 = dma.done [#allocation6], 512
        $region76: #{tpu_custom_call.1} parent=63 // pred_fallthru
          _
        // Predicated region
        $region77: #{tpu_custom_call.1} parent=63 // pred_check
          %p447 = pneg %p219
        $region78: #{tpu_custom_call.1} parent=63 // pred_check_branch
          %449 = sbr.rel (%p447) target = $region80
        $region79: #{tpu_custom_call.1} parent=63 // pred_region
          %450 = dma.done [#allocation9], 512
        $region80: #{tpu_custom_call.1} parent=63 // pred_fallthru
          _
        // Predicated region
        $region81: #{tpu_custom_call.1} parent=63 // pred_check
          %p451 = pneg %p240
        $region82: #{tpu_custom_call.1} parent=63 // pred_check_branch
          %453 = sbr.rel (%p451) target = $region84
        $region83: #{tpu_custom_call.1} parent=63 // pred_region
          %454 = dma.done [#allocation9], 512
        $region84: #{tpu_custom_call.1} parent=63 // pred_fallthru
          _
        %p455 = scmp.lt.s32.totalorder %s30, 1
        %s456 = scalar_select %p455, %s30, 1
        %s457 = scalar_lea.vmem %s0, %s456
        %p458 = pneg %p51
        %p459 = pneg %p48
        %p460 = pneg %p72
        %p461 = pneg %p69
        %p462 = pneg %p93
        %p463 = pneg %p90
        %p464 = pneg %p114
        %p465 = pneg %p111
        %p466 = pneg %p135
        %p467 = pneg %p132
        %p468 = pneg %p156
        %p469 = pneg %p153
        %p470 = pneg %p177
        %p471 = pneg %p174
        %p472 = pneg %p198
        %p473 = pneg %p195
        %p474 = pneg %p219
        %p475 = pneg %p216
        %p476 = pneg %p240
        %p477 = pneg %p237
        %p478 = scmp.lt.s32.totalorder %s30, 1
        %s479 = scalar_select %p478, %s30, 1
        %s480 = smul.addr %s479, 4
        %s481 = smul.addr %s480, 8
        %s482 = scalar_lea.vmem %s10, %s481
        %p483 = pneg %p266
        %p484 = pneg %p263
        %p485 = pneg %p292
        %p486 = pneg %p289
        %p487 = scmp.lt.s32.totalorder %s30, 1
        %s488 = scalar_select %p487, %s30, 1
        %s489 = smul.addr %s488, 4
        %s490 = smul.addr %s489, 8
        %s491 = scalar_lea.vmem %s11, %s490
        %p492 = pneg %p318
        %p493 = pneg %p315
        %s494 = sand.u32 %s305, 1
        %s495 = scalar_lea.sflag [#allocation4], %s494
        %s496 = sand.u32 %s305, 1
        %s497 = smul.addr %s496, 32
        %s498 = scalar_lea.vmem [#allocation11], %s497
        %p499 = scmp.lt.s32.totalorder %s30, 1
        %s500 = scalar_select %p499, %s30, 1
        %s501 = scalar_lea.vmem %s0, %s500
        %p502 = scmp.lt.s32.totalorder %s30, 1
        %s503 = scalar_select %p502, %s30, 1
        %s504 = smul.addr %s503, 4
        %s505 = smul.addr %s504, 8
        %s506 = scalar_lea.vmem %s10, %s505
        %p507 = scmp.lt.s32.totalorder %s30, 1
        %s508 = scalar_select %p507, %s30, 1
        %s509 = smul.addr %s508, 4
        %s510 = smul.addr %s509, 8
        %s511 = scalar_lea.vmem %s11, %s510
        %v512 = vld [vmem:[%s501] sm:$0x1]
        %v513 = vld [vmem:[%s506] sm:$0xff]
        %v514 = vld [vmem:[%s506 + $0x8] sm:$0xff]
        %v515 = vld [vmem:[%s506 + $0x10] sm:$0xff]
        %v516 = vld [vmem:[%s506 + $0x18] sm:$0xff]
        %v517 = vld [vmem:[%s1] sm:$0xff]
        %v518 = vld [vmem:[%s1 + $0x8] sm:$0xff]
        %v519 = vld [vmem:[%s1 + $0x10] sm:$0xff]
        %v520 = vld [vmem:[%s1 + $0x18] sm:$0xff]
        %v522 = vlaneseq
        %v523 = vshrl.u32 %v522, 7
        %v524 = vsub.s32 0, %v523
        %v525 = vrot.slane %v512, %v524
        %v527 = vmul.f32 %v517, %v525
        %v528 = vmul.f32 %v518, %v525
        %v529 = vmul.f32 %v519, %v525
        %v530 = vmul.f32 %v520, %v525
        %vm531 = vcmask 392192
        %v532 = vsel %vm531, %v527, 0.0
        %533 = vadd.xlane.f32.xlu0 %v532
        %v534 = vpop.xlane.xlu0 %533
        %v535 = vsel %vm531, %v528, 0.0
        %536 = vadd.xlane.f32.xlu0 %v535
        %v537 = vpop.xlane.xlu0 %536
        %v538 = vsel %vm531, %v529, 0.0
        %539 = vadd.xlane.f32.xlu0 %v538
        %v540 = vpop.xlane.xlu0 %539
        %v541 = vsel %vm531, %v530, 0.0
        %542 = vadd.xlane.f32.xlu0 %v541
        %v543 = vpop.xlane.xlu0 %542
        %v544 = vld [vmem:[%s2] sm:$0xff]
        %v545 = vld [vmem:[%s2 + $0x8] sm:$0xff]
        %v546 = vld [vmem:[%s2 + $0x10] sm:$0xff]
        %v547 = vld [vmem:[%s2 + $0x18] sm:$0xff]
        %v548 = vadd.f32 %v534, %v544
        %v549 = vadd.f32 %v537, %v545
        %v550 = vadd.f32 %v540, %v546
        %v551 = vadd.f32 %v543, %v547
        %v552 = vxor.u32 %v548, 2147483648
        %v553 = vxor.u32 %v549, 2147483648
        %v554 = vxor.u32 %v550, 2147483648
        %v555 = vxor.u32 %v551, 2147483648
        %v556 = vmul.f32 %v552, 1.442695
        %v557 = vpow.pop %v556
        %v558 = vmul.f32 %v553, 1.442695
        %v559 = vpow.pop %v558
        %v560 = vmul.f32 %v554, 1.442695
        %v561 = vpow.pop %v560
        %v562 = vmul.f32 %v555, 1.442695
        %v563 = vpow.pop %v562
        %v564 = vadd.f32 %v557, 1.0
        %v565 = vadd.f32 %v559, 1.0
        %v566 = vadd.f32 %v561, 1.0
        %v567 = vadd.f32 %v563, 1.0
        %v568 = vrcp.pop %v564
        %v569 = vmul.f32 1.0, %v568
        %v570 = vrcp.pop %v565
        %v571 = vmul.f32 1.0, %v570
        %v572 = vrcp.pop %v566
        %v573 = vmul.f32 1.0, %v572
        %v574 = vrcp.pop %v567
        %v575 = vmul.f32 1.0, %v574
        %v576 = vld [vmem:[#allocation2] sm:$0xff]
        %v577 = vld [vmem:[#allocation2 + $0x8] sm:$0xff]
        %v578 = vld [vmem:[#allocation2 + $0x10] sm:$0xff]
        %v579 = vld [vmem:[#allocation2 + $0x18] sm:$0xff]
        %v580 = vmul.f32 %v576, %v525
        %v581 = vmul.f32 %v577, %v525
        %v582 = vmul.f32 %v578, %v525
        %v583 = vmul.f32 %v579, %v525
        %v584 = vsel %vm531, %v580, 0.0
        %585 = vadd.xlane.f32.xlu0 %v584
        %v586 = vpop.xlane.xlu0 %585
        %v587 = vsel %vm531, %v581, 0.0
        %588 = vadd.xlane.f32.xlu0 %v587
        %v589 = vpop.xlane.xlu0 %588
        %v590 = vsel %vm531, %v582, 0.0
        %591 = vadd.xlane.f32.xlu0 %v590
        %v592 = vpop.xlane.xlu0 %591
        %v593 = vsel %vm531, %v583, 0.0
        %594 = vadd.xlane.f32.xlu0 %v593
        %v595 = vpop.xlane.xlu0 %594
        %v596 = vld [vmem:[%s4] sm:$0xff]
        %v597 = vld [vmem:[%s4 + $0x8] sm:$0xff]
        %v598 = vld [vmem:[%s4 + $0x10] sm:$0xff]
        %v599 = vld [vmem:[%s4 + $0x18] sm:$0xff]
        %v600 = vadd.f32 %v586, %v596
        %v601 = vadd.f32 %v589, %v597
        %v602 = vadd.f32 %v592, %v598
        %v603 = vadd.f32 %v595, %v599
        %v604 = vxor.u32 %v600, 2147483648
        %v605 = vxor.u32 %v601, 2147483648
        %v606 = vxor.u32 %v602, 2147483648
        %v607 = vxor.u32 %v603, 2147483648
        %v608 = vmul.f32 %v604, 1.442695
        %v609 = vpow.pop %v608
        %v610 = vmul.f32 %v605, 1.442695
        %v611 = vpow.pop %v610
        %v612 = vmul.f32 %v606, 1.442695
        %v613 = vpow.pop %v612
        %v614 = vmul.f32 %v607, 1.442695
        %v615 = vpow.pop %v614
        %v616 = vadd.f32 %v609, 1.0
        %v617 = vadd.f32 %v611, 1.0
        %v618 = vadd.f32 %v613, 1.0
        %v619 = vadd.f32 %v615, 1.0
        %v620 = vrcp.pop %v616
        %v621 = vmul.f32 1.0, %v620
        %v622 = vrcp.pop %v617
        %v623 = vmul.f32 1.0, %v622
        %v624 = vrcp.pop %v618
        %v625 = vmul.f32 1.0, %v624
        %v626 = vrcp.pop %v619
        %v627 = vmul.f32 1.0, %v626
        %v628 = vmul.f32 %v513, %v525
        %v629 = vmul.f32 %v514, %v525
        %v630 = vmul.f32 %v515, %v525
        %v631 = vmul.f32 %v516, %v525
        %v632 = vsel %vm531, %v628, 0.0
        %633 = vadd.xlane.f32.xlu0 %v632
        %v634 = vpop.xlane.xlu0 %633
        %v635 = vsel %vm531, %v629, 0.0
        %636 = vadd.xlane.f32.xlu0 %v635
        %v637 = vpop.xlane.xlu0 %636
        %v638 = vsel %vm531, %v630, 0.0
        %639 = vadd.xlane.f32.xlu0 %v638
        %v640 = vpop.xlane.xlu0 %639
        %v641 = vsel %vm531, %v631, 0.0
        %642 = vadd.xlane.f32.xlu0 %v641
        %v643 = vpop.xlane.xlu0 %642
        %v644 = vld [vmem:[%s5] sm:$0xff]
        %v645 = vld [vmem:[%s5 + $0x8] sm:$0xff]
        %v646 = vld [vmem:[%s5 + $0x10] sm:$0xff]
        %v647 = vld [vmem:[%s5 + $0x18] sm:$0xff]
        %v648 = vadd.f32 %v634, %v644
        %v649 = vadd.f32 %v637, %v645
        %v650 = vadd.f32 %v640, %v646
        %v651 = vadd.f32 %v643, %v647
        %v652 = vtanh.pop %v648
        %v653 = vtanh.pop %v649
        %v654 = vtanh.pop %v650
        %v655 = vtanh.pop %v651
        %v656 = vmul.f32 %v569, 0.01
        %v657 = vmul.f32 %v571, 0.01
        %v658 = vmul.f32 %v573, 0.01
        %v659 = vmul.f32 %v575, 0.01
        %v660 = vsub.f32 1.0, %v656
        %v661 = vsub.f32 1.0, %v657
        %v662 = vsub.f32 1.0, %v658
        %v663 = vsub.f32 1.0, %v659
        %v664 = vmul.f32 %v621, 0.001
        %v665 = vmul.f32 %v623, 0.001
        %v666 = vmul.f32 %v625, 0.001
        %v667 = vmul.f32 %v627, 0.001
        %v668 = vld [vmem:[#allocation5] sm:$0xff]
        %v669 = vld [vmem:[#allocation5 + $0x8] sm:$0xff]
        %v670 = vld [vmem:[#allocation5 + $0x10] sm:$0xff]
        %v671 = vld [vmem:[#allocation5 + $0x18] sm:$0xff]
        %673 = vset.pattern.permute.xlu0 0
        %674 = vperm.xlu0 %673, %v652
        %v675 = vpop.permute.xlu0 %674
        %678 = vset.pattern.permute.xlu0 0
        %679 = vperm.xlu0 %678, %v653
        %v680 = vpop.permute.xlu0 %679
        %683 = vset.pattern.permute.xlu0 0
        %684 = vperm.xlu0 %683, %v654
        %v685 = vpop.permute.xlu0 %684
        %688 = vset.pattern.permute.xlu0 0
        %689 = vperm.xlu0 %688, %v655
        %v690 = vpop.permute.xlu0 %689
        %v692 = vmul.f32 %v675, %v668
        %v693 = vmul.f32 %v680, %v669
        %v694 = vmul.f32 %v685, %v670
        %v695 = vmul.f32 %v690, %v671
        %v696 = vld [vmem:[#allocation7] sm:$0xff]
        %v697 = vld [vmem:[#allocation7 + $0x8] sm:$0xff]
        %v698 = vld [vmem:[#allocation7 + $0x10] sm:$0xff]
        %v699 = vld [vmem:[#allocation7 + $0x18] sm:$0xff]
        %v700 = vadd.f32 %v692, %v696
        %v701 = vadd.f32 %v693, %v697
        %v702 = vadd.f32 %v694, %v698
        %v703 = vadd.f32 %v695, %v699
        %v704 = vmul.f32 %v525, %v700
        %v705 = vmul.f32 %v525, %v701
        %v706 = vmul.f32 %v525, %v702
        %v707 = vmul.f32 %v525, %v703
        %v708 = vld [vmem:[#allocation8] sm:$0xff]
        %v709 = vld [vmem:[#allocation8 + $0x8] sm:$0xff]
        %v710 = vld [vmem:[#allocation8 + $0x10] sm:$0xff]
        %v711 = vld [vmem:[#allocation8 + $0x18] sm:$0xff]
        %v712 = vmul.f32 %v675, %v708
        %v713 = vmul.f32 %v680, %v709
        %v714 = vmul.f32 %v685, %v710
        %v715 = vmul.f32 %v690, %v711
        %v716 = vld [vmem:[#allocation10] sm:$0xff]
        %v717 = vld [vmem:[#allocation10 + $0x8] sm:$0xff]
        %v718 = vld [vmem:[#allocation10 + $0x10] sm:$0xff]
        %v719 = vld [vmem:[#allocation10 + $0x18] sm:$0xff]
        %v720 = vadd.f32 %v712, %v716
        %v721 = vadd.f32 %v713, %v717
        %v722 = vadd.f32 %v714, %v718
        %v723 = vadd.f32 %v715, %v719
        %v724 = vadd.f32 %v704, %v720
        %v725 = vadd.f32 %v705, %v721
        %v726 = vadd.f32 %v706, %v722
        %v727 = vadd.f32 %v707, %v723
        %729 = vset.pattern.permute.xlu0 0
        %730 = vperm.xlu0 %729, %v660
        %v731 = vpop.permute.xlu0 %730
        %734 = vset.pattern.permute.xlu0 0
        %735 = vperm.xlu0 %734, %v661
        %v736 = vpop.permute.xlu0 %735
        %739 = vset.pattern.permute.xlu0 0
        %740 = vperm.xlu0 %739, %v662
        %v741 = vpop.permute.xlu0 %740
        %744 = vset.pattern.permute.xlu0 0
        %745 = vperm.xlu0 %744, %v663
        %v746 = vpop.permute.xlu0 %745
        %v748 = vmul.f32 %v513, %v731
        %v749 = vmul.f32 %v514, %v736
        %v750 = vmul.f32 %v515, %v741
        %v751 = vmul.f32 %v516, %v746
        %753 = vset.pattern.permute.xlu0 0
        %754 = vperm.xlu0 %753, %v664
        %v755 = vpop.permute.xlu0 %754
        %758 = vset.pattern.permute.xlu0 0
        %759 = vperm.xlu0 %758, %v665
        %v760 = vpop.permute.xlu0 %759
        %763 = vset.pattern.permute.xlu0 0
        %764 = vperm.xlu0 %763, %v666
        %v765 = vpop.permute.xlu0 %764
        %768 = vset.pattern.permute.xlu0 0
        %769 = vperm.xlu0 %768, %v667
        %v770 = vpop.permute.xlu0 %769
        %v772 = vmul.f32 %v755, %v724
        %v773 = vmul.f32 %v760, %v725
        %v774 = vmul.f32 %v765, %v726
        %v775 = vmul.f32 %v770, %v727
        %v776 = vadd.f32 %v748, %v772
        %v777 = vadd.f32 %v749, %v773
        %v778 = vadd.f32 %v750, %v774
        %v779 = vadd.f32 %v751, %v775
        %780 = vst.msk [vmem:[%s498] sm:$0xff] %vm531, %v776
        %781 = vst.msk [vmem:[%s498 + $0x8] sm:$0xff] %vm531, %v777
        %782 = vst.msk [vmem:[%s498 + $0x10] sm:$0xff] %vm531, %v778
        %783 = vst.msk [vmem:[%s498 + $0x18] sm:$0xff] %vm531, %v779
        %vm784 = vcmask 7168
        %785 = vst.msk [vmem:[%s511] sm:$0xff] %vm784, %v652
        %786 = vst.msk [vmem:[%s511 + $0x8] sm:$0xff] %vm784, %v653
        %787 = vst.msk [vmem:[%s511 + $0x10] sm:$0xff] %vm784, %v654
        %788 = vst.msk [vmem:[%s511 + $0x18] sm:$0xff] %vm784, %v655
        %p789 = scmp.lt.s32.totalorder %s30, 1
        %s790 = scalar_select %p789, %s30, 1
        %s791 = smul.addr %s790, 4
        %s792 = smul.addr %s791, 8
        %s793 = scalar_lea.vmem %s11, %s792
        %s794 = sand.u32 %s305, 1
        %s795 = scalar_lea.sflag [#allocation4], %s794
        %s796 = sand.u32 %s305, 1
        %s797 = smul.addr %s796, 32
        %s798 = scalar_lea.vmem [#allocation11], %s797
        // Predicated region
        $region85: #{tpu_custom_call.1} parent=63 // pred_check
          %p799 = pneg %p289
        $region86: #{tpu_custom_call.1} parent=63 // pred_check_branch
          %801 = sbr.rel (%p799) target = $region88
        $region87: #{tpu_custom_call.1} parent=63 // pred_region
          _
        $region88: #{tpu_custom_call.1} parent=63 // pred_fallthru
          _
        // Predicated region
        $region89: #{tpu_custom_call.1} parent=63 // pred_check
          %p802 = pneg %p315
        $region90: #{tpu_custom_call.1} parent=63 // pred_check_branch
          %804 = sbr.rel (%p802) target = $region92
        $region91: #{tpu_custom_call.1} parent=63 // pred_region
          %s806 = ssub.s32 512, 512
          %807 = vsyncadd %s795, %s806
          %s808 = smul.addr %s30, 4
          %s809 = smul.addr %s808, 128
          %s810 = scalar_lea.hbm %s12, %s809
          %s811 = sshll.u32 %s798, 4
          %s812 = int_to_ptr.vmem [resolvable:$true] %s811
          %817 = dma.vmem_to_hbm [thread:$0]  %s812, 512, %s810, %s795, 128, 128, 8
        $region92: #{tpu_custom_call.1} parent=63 // pred_fallthru
          _
      $region64: #{tpu_custom_call.1} parent=5 // pred_fallthru
        _
      %p818 = scmp.le.s32.totalorder 2, %s25
      // Predicated region
      $region93: #{tpu_custom_call.1} parent=5 // pred_check
        %p819 = pneg %p818
      $region94: #{tpu_custom_call.1} parent=5 // pred_check_branch
        %821 = sbr.rel (%p819) target = $region96
      $region95: #{tpu_custom_call.1} parent=5 // pred_region
        %s822 = ssub.s32 %s25, 2
        // Predicated region
        $region97: #{tpu_custom_call.1} parent=95 // pred_check
          %p823 = pneg %p295
        $region98: #{tpu_custom_call.1} parent=95 // pred_check_branch
          %825 = sbr.rel (%p823) target = $region100
        $region99: #{tpu_custom_call.1} parent=95 // pred_region
          %p826 = scmp.lt.s32.totalorder %s31, 1
          %s827 = scalar_select %p826, %s31, 1
          %s828 = smul.addr %s827, 4
          %s829 = smul.addr %s828, 8
          %s830 = scalar_lea.vmem %s11, %s829
        $region100: #{tpu_custom_call.1} parent=95 // pred_fallthru
          _
        // Predicated region
        $region101: #{tpu_custom_call.1} parent=95 // pred_check
          %p831 = pneg %p321
        $region102: #{tpu_custom_call.1} parent=95 // pred_check_branch
          %833 = sbr.rel (%p831) target = $region104
        $region103: #{tpu_custom_call.1} parent=95 // pred_region
          %s834 = sand.u32 %s306, 1
          %s835 = scalar_lea.sflag [#allocation4], %s834
          %s836 = sand.u32 %s306, 1
          %s837 = smul.addr %s836, 32
          %s838 = scalar_lea.vmem [#allocation11], %s837
          %839 = dma.done %s835, 512
        $region104: #{tpu_custom_call.1} parent=95 // pred_fallthru
          _
      $region96: #{tpu_custom_call.1} parent=5 // pred_fallthru
        _
    $region6: #{tpu_custom_call.1} parent=1 // loop_footer
      %s29 = sadd.s32 1, %s25
    $region7: #{tpu_custom_call.1} parent=1 // loop_footer_branch
      %24 = sbr.rel target = $region3
    $region8: #{tpu_custom_call.1} parent=1 // loop_exit
      _
    %840 = vsyncpa [#allocation3], 1
    %s841 = scalar_lea.sflag [#allocation3], 1
    %842 = vsyncpa %s841, 1
    %843 = vsyncpa [#allocation6], 1
    %844 = vsyncpa [#allocation9], 1
    %845 = vsyncpa [#allocation4], 1
    %s846 = scalar_lea.sflag [#allocation4], 1
    %847 = vsyncpa %s846, 1

</llo_original>
